<compile_context>
chip_gen: v7x
topology: tpu7x:2x2x1
jax: 0.10.0
libtpu: 0.0.40
codegen_flags: <defaults>
</compile_context>

<pallas_src>
import jax
import jax.numpy as jnp
from jax import lax
from jax.experimental import pallas as pl
from jax.experimental.pallas import tpu as pltpu


def mha_kernel(x_ref, wqkv_ref, bqkv_ref, wo_ref, bo_ref, o_ref):
    x32 = x_ref[0]                                  # (S, E) f32 (exact residual)
    S, E = x32.shape
    H = wqkv_ref.shape[-1] // (3 * E)
    xb = x32.astype(jnp.bfloat16)                   # bf16 operand for the MXU

    # Fused QKV projection for all heads: one MXU pass, bf16 in, f32 out.
    # The 1/sqrt(E) scale is pre-folded into the q columns/bias by the wrapper.
    qkv = jnp.dot(xb, wqkv_ref[...], preferred_element_type=jnp.float32)
    qkv = qkv + bqkv_ref[...]                       # (S, 3*H*E) f32

    heads = []
    for h in range(H):                              # H is small; statically unrolled
        q = qkv[:, h * E:(h + 1) * E]               # already scaled by 1/sqrt(E)
        k = qkv[:, (H + h) * E:(H + h + 1) * E]
        v = qkv[:, (2 * H + h) * E:(2 * H + h + 1) * E]

        # q @ k^T without materializing the transpose (contract last axis of both).
        s = lax.dot_general(q.astype(jnp.bfloat16), k.astype(jnp.bfloat16),
                            (((1,), (1,)), ((), ())),
                            preferred_element_type=jnp.float32)   # (S, S) f32
        s = s - jnp.max(s, axis=-1, keepdims=True)
        p = jnp.exp(s)
        l = jnp.sum(p, axis=-1, keepdims=True)
        # Un-normalized PV matmul; normalize afterwards via EUP reciprocal.
        pv = jnp.dot(p.astype(jnp.bfloat16), v.astype(jnp.bfloat16),
                     preferred_element_type=jnp.float32)          # (S, E) f32
        pv = pv * pl.reciprocal(l, approx=True)
        heads.append(pv.astype(jnp.bfloat16))
        # dropout == identity in eval mode

    cat = jnp.concatenate(heads, axis=-1)           # (S, H*E) bf16, lane-dense
    out = jnp.dot(cat, wo_ref[...],
                  preferred_element_type=jnp.float32)             # (S, E) f32
    o_ref[0] = (out + bo_ref[...] + x32).astype(o_ref.dtype)


def mha_forward(x, params):
    B, S, E = x.shape
    H = params["wq"].shape[0]
    scale = E ** (-0.5)

    # ---- parameter packing (plain XLA ops, outside the kernel) ----
    def to_cols(w):  # (H, E, E) -> (E, H*E); column block h == w[h]
        return jnp.transpose(w, (1, 0, 2)).reshape(E, H * E)

    wqkv = jnp.concatenate(
        [to_cols(params["wq"]) * scale,             # fold 1/sqrt(E) into q
         to_cols(params["wk"]),
         to_cols(params["wv"])], axis=1).astype(jnp.bfloat16)          # (E, 3*H*E)
    bqkv = jnp.concatenate(
        [params["bq"].reshape(1, H * E) * scale,
         params["bk"].reshape(1, H * E),
         params["bv"].reshape(1, H * E)], axis=1).astype(jnp.float32)  # (1, 3*H*E)
    wo = params["wo"].reshape(H * E, E).astype(jnp.bfloat16)           # (H*E, E)
    bo = params["bo"].astype(jnp.float32)                              # (1, E)

    return pl.pallas_call(
        mha_kernel,
        out_shape=jax.ShapeDtypeStruct((B, S, E), jnp.float32),
        grid_spec=pltpu.PrefetchScalarGridSpec(
            num_scalar_prefetch=0,
            grid=(B,),
            in_specs=[
                pl.BlockSpec((1, S, E), lambda b: (b, 0, 0)),          # x (per batch, f32)
                pl.BlockSpec((E, 3 * H * E), lambda b: (0, 0)),        # fused Wqkv (resident)
                pl.BlockSpec((1, 3 * H * E), lambda b: (0, 0)),        # fused bqkv
                pl.BlockSpec((H * E, E), lambda b: (0, 0)),            # Wo (resident)
                pl.BlockSpec((1, E), lambda b: (0, 0)),                # bo
            ],
            out_specs=pl.BlockSpec((1, S, E), lambda b: (b, 0, 0)),
        ),
        compiler_params=pltpu.CompilerParams(
            dimension_semantics=("parallel",)),
    )(x, wqkv, bqkv, wo, bo)


def mha_reference(x, params):
    """Pure-JAX f32 reference mirroring the PyTorch MHA forward (eval mode, mask=None)."""
    B, S, E = x.shape
    H = params["wq"].shape[0]
    heads = []
    for h in range(H):
        q = x @ params["wq"][h] + params["bq"][h]
        k = x @ params["wk"][h] + params["bk"][h]
        v = x @ params["wv"][h] + params["bv"][h]
        s = jnp.einsum("bse,bte->bst", q, k) * (E ** -0.5)
        p = jax.nn.softmax(s, axis=-1)
        heads.append(jnp.einsum("bst,bte->bse", p, v))
    cat = jnp.concatenate(heads, axis=-1)                    # (B, S, H*E)
    wo_full = params["wo"].reshape(H * E, E)
    return cat @ wo_full + params["bo"][0] + x


if __name__ == "__main__":
    B, S, E, H = 2, 8, 32, 4
    key = jax.random.PRNGKey(0)
    keys = jax.random.split(key, 9)

    def init(k, shape, scale=0.05):
        return jax.random.normal(k, shape, jnp.float32) * scale

    x = jax.random.normal(keys[0], (B, S, E), jnp.float32)
    params = dict(
        wq=init(keys[1], (H, E, E)),
        wk=init(keys[2], (H, E, E)),
        wv=init(keys[3], (H, E, E)),
        bq=init(keys[4], (H, 1, E)),
        bk=init(keys[5], (H, 1, E)),
        bv=init(keys[6], (H, 1, E)),
        wo=init(keys[7], (H, E, E)),
        bo=init(keys[8], (1, E)),
    )

    out = jax.jit(mha_forward)(x, params)
    jax.block_until_ready(out)

    ref = mha_reference(x, params)
    assert out.shape == (B, S, E)
    # bf16 MXU operands + approx reciprocal -> compare against the f32 reference
    # with a mixed-precision tolerance.
    assert jnp.allclose(out, ref, atol=2e-2, rtol=2e-2), "mismatch vs reference"

    print("KERNEL_OK")
</pallas_src>

<mosaic_0001>
module attributes {stable_mosaic.version = 11 : i64} {
  func.func @mha_kernel(%arg0: i32, %arg1: memref<1x8x32xf32, #tpu.memory_space<vmem>>, %arg2: memref<32x384xbf16, #tpu.memory_space<vmem>>, %arg3: memref<1x384xf32, #tpu.memory_space<vmem>>, %arg4: memref<128x32xbf16, #tpu.memory_space<vmem>>, %arg5: memref<1x32xf32, #tpu.memory_space<vmem>>, %arg6: memref<1x8x32xf32, #tpu.memory_space<vmem>>) attributes {dimension_semantics = [#tpu.dimension_semantics<parallel>], iteration_bounds = array<i64: 2>, scalar_prefetch = 0 : i64, scratch_operands = 0 : i64, tpu.core_type = #tpu.core_type<tc>, window_params = [{transform_indices = @transform_0, window_bounds = array<i64: 1, 8, 32>}, {pipeline_mode = #tpu.pipeline_mode<synchronous>, transform_indices = @transform_1, window_bounds = array<i64: 32, 384>}, {pipeline_mode = #tpu.pipeline_mode<synchronous>, transform_indices = @transform_2, window_bounds = array<i64: 1, 384>}, {pipeline_mode = #tpu.pipeline_mode<synchronous>, transform_indices = @transform_3, window_bounds = array<i64: 128, 32>}, {pipeline_mode = #tpu.pipeline_mode<synchronous>, transform_indices = @transform_4, window_bounds = array<i64: 1, 32>}, {transform_indices = @transform_5, window_bounds = array<i64: 1, 8, 32>}]} {
    %c0 = arith.constant 0 : index
    %c0_0 = arith.constant 0 : index
    %c0_1 = arith.constant 0 : index
    %0 = vector.load %arg1[%c0, %c0_0, %c0_1] : memref<1x8x32xf32, #tpu.memory_space<vmem>>, vector<1x8x32xf32>
    %1 = vector.shape_cast %0 : vector<1x8x32xf32> to vector<8x32xf32>
    %2 = arith.truncf %1 : vector<8x32xf32> to vector<8x32xbf16>
    %c0_2 = arith.constant 0 : index
    %c0_3 = arith.constant 0 : index
    %3 = vector.load %arg2[%c0_2, %c0_3] : memref<32x384xbf16, #tpu.memory_space<vmem>>, vector<32x384xbf16>
    %cst = arith.constant dense<0.000000e+00> : vector<8x384xf32>
    %4 = tpu.matmul %2, %3, %cst {dimension_numbers = #tpu.dot_dimension_numbers<[1], [0], [0], [1], [0, 0, 1, 1], [], []>} : vector<8x32xbf16>, vector<32x384xbf16>, vector<8x384xf32> -> vector<8x384xf32>
    %c0_4 = arith.constant 0 : index
    %c0_5 = arith.constant 0 : index
    %5 = vector.load %arg3[%c0_4, %c0_5] : memref<1x384xf32, #tpu.memory_space<vmem>>, vector<1x384xf32>
    %6 = vector.broadcast %5 : vector<1x384xf32> to vector<8x384xf32>
    %7 = arith.addf %4, %6 : vector<8x384xf32>
    %8 = vector.extract_strided_slice %7 {offsets = [0, 0], sizes = [8, 32], strides = [1, 1]} : vector<8x384xf32> to vector<8x32xf32>
    %9 = vector.extract_strided_slice %7 {offsets = [0, 128], sizes = [8, 32], strides = [1, 1]} : vector<8x384xf32> to vector<8x32xf32>
    %10 = vector.extract_strided_slice %7 {offsets = [0, 256], sizes = [8, 32], strides = [1, 1]} : vector<8x384xf32> to vector<8x32xf32>
    %11 = arith.truncf %8 : vector<8x32xf32> to vector<8x32xbf16>
    %12 = arith.truncf %9 : vector<8x32xf32> to vector<8x32xbf16>
    %cst_6 = arith.constant dense<0.000000e+00> : vector<8x8xf32>
    %13 = tpu.matmul %11, %12, %cst_6 {dimension_numbers = #tpu.dot_dimension_numbers<[1], [1], [0], [0], [0, 0, 1, 0], [], []>} : vector<8x32xbf16>, vector<8x32xbf16>, vector<8x8xf32> -> vector<8x8xf32>
    %cst_7 = arith.constant dense<0xFF800000> : vector<8xf32>
    %14 = vector.multi_reduction <maximumf>, %13, %cst_7 [1] : vector<8x8xf32> to vector<8xf32>
    %15 = vector.shape_cast %14 : vector<8xf32> to vector<8x1xf32>
    %16 = vector.broadcast %15 : vector<8x1xf32> to vector<8x8xf32>
    %17 = arith.subf %13, %16 : vector<8x8xf32>
    %18 = math.exp %17 : vector<8x8xf32>
    %cst_8 = arith.constant dense<0.000000e+00> : vector<8xf32>
    %19 = vector.multi_reduction <add>, %18, %cst_8 [1] : vector<8x8xf32> to vector<8xf32>
    %20 = vector.shape_cast %19 : vector<8xf32> to vector<8x1xf32>
    %21 = arith.truncf %18 : vector<8x8xf32> to vector<8x8xbf16>
    %22 = arith.truncf %10 : vector<8x32xf32> to vector<8x32xbf16>
    %cst_9 = arith.constant dense<0.000000e+00> : vector<8x32xf32>
    %23 = tpu.matmul %21, %22, %cst_9 {dimension_numbers = #tpu.dot_dimension_numbers<[1], [0], [0], [1], [0, 0, 1, 1], [], []>} : vector<8x8xbf16>, vector<8x32xbf16>, vector<8x32xf32> -> vector<8x32xf32>
    %24 = tpu.reciprocal %20 {approx = true} : vector<8x1xf32> -> vector<8x1xf32>
    %25 = vector.broadcast %24 : vector<8x1xf32> to vector<8x32xf32>
    %26 = arith.mulf %23, %25 : vector<8x32xf32>
    %27 = arith.truncf %26 : vector<8x32xf32> to vector<8x32xbf16>
    %28 = vector.extract_strided_slice %7 {offsets = [0, 32], sizes = [8, 32], strides = [1, 1]} : vector<8x384xf32> to vector<8x32xf32>
    %29 = vector.extract_strided_slice %7 {offsets = [0, 160], sizes = [8, 32], strides = [1, 1]} : vector<8x384xf32> to vector<8x32xf32>
    %30 = vector.extract_strided_slice %7 {offsets = [0, 288], sizes = [8, 32], strides = [1, 1]} : vector<8x384xf32> to vector<8x32xf32>
    %31 = arith.truncf %28 : vector<8x32xf32> to vector<8x32xbf16>
    %32 = arith.truncf %29 : vector<8x32xf32> to vector<8x32xbf16>
    %cst_10 = arith.constant dense<0.000000e+00> : vector<8x8xf32>
    %33 = tpu.matmul %31, %32, %cst_10 {dimension_numbers = #tpu.dot_dimension_numbers<[1], [1], [0], [0], [0, 0, 1, 0], [], []>} : vector<8x32xbf16>, vector<8x32xbf16>, vector<8x8xf32> -> vector<8x8xf32>
    %cst_11 = arith.constant dense<0xFF800000> : vector<8xf32>
    %34 = vector.multi_reduction <maximumf>, %33, %cst_11 [1] : vector<8x8xf32> to vector<8xf32>
    %35 = vector.shape_cast %34 : vector<8xf32> to vector<8x1xf32>
    %36 = vector.broadcast %35 : vector<8x1xf32> to vector<8x8xf32>
    %37 = arith.subf %33, %36 : vector<8x8xf32>
    %38 = math.exp %37 : vector<8x8xf32>
    %cst_12 = arith.constant dense<0.000000e+00> : vector<8xf32>
    %39 = vector.multi_reduction <add>, %38, %cst_12 [1] : vector<8x8xf32> to vector<8xf32>
    %40 = vector.shape_cast %39 : vector<8xf32> to vector<8x1xf32>
    %41 = arith.truncf %38 : vector<8x8xf32> to vector<8x8xbf16>
    %42 = arith.truncf %30 : vector<8x32xf32> to vector<8x32xbf16>
    %cst_13 = arith.constant dense<0.000000e+00> : vector<8x32xf32>
    %43 = tpu.matmul %41, %42, %cst_13 {dimension_numbers = #tpu.dot_dimension_numbers<[1], [0], [0], [1], [0, 0, 1, 1], [], []>} : vector<8x8xbf16>, vector<8x32xbf16>, vector<8x32xf32> -> vector<8x32xf32>
    %44 = tpu.reciprocal %40 {approx = true} : vector<8x1xf32> -> vector<8x1xf32>
    %45 = vector.broadcast %44 : vector<8x1xf32> to vector<8x32xf32>
    %46 = arith.mulf %43, %45 : vector<8x32xf32>
    %47 = arith.truncf %46 : vector<8x32xf32> to vector<8x32xbf16>
    %48 = vector.extract_strided_slice %7 {offsets = [0, 64], sizes = [8, 32], strides = [1, 1]} : vector<8x384xf32> to vector<8x32xf32>
    %49 = vector.extract_strided_slice %7 {offsets = [0, 192], sizes = [8, 32], strides = [1, 1]} : vector<8x384xf32> to vector<8x32xf32>
    %50 = vector.extract_strided_slice %7 {offsets = [0, 320], sizes = [8, 32], strides = [1, 1]} : vector<8x384xf32> to vector<8x32xf32>
    %51 = arith.truncf %48 : vector<8x32xf32> to vector<8x32xbf16>
    %52 = arith.truncf %49 : vector<8x32xf32> to vector<8x32xbf16>
    %cst_14 = arith.constant dense<0.000000e+00> : vector<8x8xf32>
    %53 = tpu.matmul %51, %52, %cst_14 {dimension_numbers = #tpu.dot_dimension_numbers<[1], [1], [0], [0], [0, 0, 1, 0], [], []>} : vector<8x32xbf16>, vector<8x32xbf16>, vector<8x8xf32> -> vector<8x8xf32>
    %cst_15 = arith.constant dense<0xFF800000> : vector<8xf32>
    %54 = vector.multi_reduction <maximumf>, %53, %cst_15 [1] : vector<8x8xf32> to vector<8xf32>
    %55 = vector.shape_cast %54 : vector<8xf32> to vector<8x1xf32>
    %56 = vector.broadcast %55 : vector<8x1xf32> to vector<8x8xf32>
    %57 = arith.subf %53, %56 : vector<8x8xf32>
    %58 = math.exp %57 : vector<8x8xf32>
    %cst_16 = arith.constant dense<0.000000e+00> : vector<8xf32>
    %59 = vector.multi_reduction <add>, %58, %cst_16 [1] : vector<8x8xf32> to vector<8xf32>
    %60 = vector.shape_cast %59 : vector<8xf32> to vector<8x1xf32>
    %61 = arith.truncf %58 : vector<8x8xf32> to vector<8x8xbf16>
    %62 = arith.truncf %50 : vector<8x32xf32> to vector<8x32xbf16>
    %cst_17 = arith.constant dense<0.000000e+00> : vector<8x32xf32>
    %63 = tpu.matmul %61, %62, %cst_17 {dimension_numbers = #tpu.dot_dimension_numbers<[1], [0], [0], [1], [0, 0, 1, 1], [], []>} : vector<8x8xbf16>, vector<8x32xbf16>, vector<8x32xf32> -> vector<8x32xf32>
    %64 = tpu.reciprocal %60 {approx = true} : vector<8x1xf32> -> vector<8x1xf32>
    %65 = vector.broadcast %64 : vector<8x1xf32> to vector<8x32xf32>
    %66 = arith.mulf %63, %65 : vector<8x32xf32>
    %67 = arith.truncf %66 : vector<8x32xf32> to vector<8x32xbf16>
    %68 = vector.extract_strided_slice %7 {offsets = [0, 96], sizes = [8, 32], strides = [1, 1]} : vector<8x384xf32> to vector<8x32xf32>
    %69 = vector.extract_strided_slice %7 {offsets = [0, 224], sizes = [8, 32], strides = [1, 1]} : vector<8x384xf32> to vector<8x32xf32>
    %70 = vector.extract_strided_slice %7 {offsets = [0, 352], sizes = [8, 32], strides = [1, 1]} : vector<8x384xf32> to vector<8x32xf32>
    %71 = arith.truncf %68 : vector<8x32xf32> to vector<8x32xbf16>
    %72 = arith.truncf %69 : vector<8x32xf32> to vector<8x32xbf16>
    %cst_18 = arith.constant dense<0.000000e+00> : vector<8x8xf32>
    %73 = tpu.matmul %71, %72, %cst_18 {dimension_numbers = #tpu.dot_dimension_numbers<[1], [1], [0], [0], [0, 0, 1, 0], [], []>} : vector<8x32xbf16>, vector<8x32xbf16>, vector<8x8xf32> -> vector<8x8xf32>
    %cst_19 = arith.constant dense<0xFF800000> : vector<8xf32>
    %74 = vector.multi_reduction <maximumf>, %73, %cst_19 [1] : vector<8x8xf32> to vector<8xf32>
    %75 = vector.shape_cast %74 : vector<8xf32> to vector<8x1xf32>
    %76 = vector.broadcast %75 : vector<8x1xf32> to vector<8x8xf32>
    %77 = arith.subf %73, %76 : vector<8x8xf32>
    %78 = math.exp %77 : vector<8x8xf32>
    %cst_20 = arith.constant dense<0.000000e+00> : vector<8xf32>
    %79 = vector.multi_reduction <add>, %78, %cst_20 [1] : vector<8x8xf32> to vector<8xf32>
    %80 = vector.shape_cast %79 : vector<8xf32> to vector<8x1xf32>
    %81 = arith.truncf %78 : vector<8x8xf32> to vector<8x8xbf16>
    %82 = arith.truncf %70 : vector<8x32xf32> to vector<8x32xbf16>
    %cst_21 = arith.constant dense<0.000000e+00> : vector<8x32xf32>
    %83 = tpu.matmul %81, %82, %cst_21 {dimension_numbers = #tpu.dot_dimension_numbers<[1], [0], [0], [1], [0, 0, 1, 1], [], []>} : vector<8x8xbf16>, vector<8x32xbf16>, vector<8x32xf32> -> vector<8x32xf32>
    %84 = tpu.reciprocal %80 {approx = true} : vector<8x1xf32> -> vector<8x1xf32>
    %85 = vector.broadcast %84 : vector<8x1xf32> to vector<8x32xf32>
    %86 = arith.mulf %83, %85 : vector<8x32xf32>
    %87 = arith.truncf %86 : vector<8x32xf32> to vector<8x32xbf16>
    %88 = tpu.concatenate %27, %47, %67, %87 in 1 : vector<8x32xbf16>, vector<8x32xbf16>, vector<8x32xbf16>, vector<8x32xbf16> -> vector<8x128xbf16>
    %c0_22 = arith.constant 0 : index
    %c0_23 = arith.constant 0 : index
    %89 = vector.load %arg4[%c0_22, %c0_23] : memref<128x32xbf16, #tpu.memory_space<vmem>>, vector<128x32xbf16>
    %cst_24 = arith.constant dense<0.000000e+00> : vector<8x32xf32>
    %90 = tpu.matmul %88, %89, %cst_24 {dimension_numbers = #tpu.dot_dimension_numbers<[1], [0], [0], [1], [0, 0, 1, 1], [], []>} : vector<8x128xbf16>, vector<128x32xbf16>, vector<8x32xf32> -> vector<8x32xf32>
    %c0_25 = arith.constant 0 : index
    %c0_26 = arith.constant 0 : index
    %91 = vector.load %arg5[%c0_25, %c0_26] : memref<1x32xf32, #tpu.memory_space<vmem>>, vector<1x32xf32>
    %92 = vector.broadcast %91 : vector<1x32xf32> to vector<8x32xf32>
    %93 = arith.addf %90, %92 : vector<8x32xf32>
    %94 = arith.addf %93, %1 : vector<8x32xf32>
    %c0_27 = arith.constant 0 : index
    %c0_28 = arith.constant 0 : index
    %c0_29 = arith.constant 0 : index
    %95 = vector.load %arg6[%c0_27, %c0_28, %c0_29] : memref<1x8x32xf32, #tpu.memory_space<vmem>>, vector<1x8x32xf32>
    %96 = vector.shape_cast %95 : vector<1x8x32xf32> to vector<8x32xf32>
    %97 = vector.shape_cast %94 : vector<8x32xf32> to vector<1x8x32xf32>
    tpu.vector_store %arg6[%c0_27, %c0_28, %c0_29], %97 {strides = array<i32>} : memref<1x8x32xf32, #tpu.memory_space<vmem>>, vector<1x8x32xf32>,
    return
  }
  func.func @transform_0(%arg0: i32) -> (i32, i32, i32) {
    %c0_i32 = arith.constant 0 : i32
    %c0_i32_0 = arith.constant 0 : i32
    %c0_i32_1 = arith.constant 0 : i32
    return %arg0, %c0_i32, %c0_i32_0 : i32, i32, i32
  }
  func.func @transform_1(%arg0: i32) -> (i32, i32) {
    %c0_i32 = arith.constant 0 : i32
    %c0_i32_0 = arith.constant 0 : i32
    %c0_i32_1 = arith.constant 0 : i32
    return %c0_i32, %c0_i32_0 : i32, i32
  }
  func.func @transform_2(%arg0: i32) -> (i32, i32) {
    %c0_i32 = arith.constant 0 : i32
    %c0_i32_0 = arith.constant 0 : i32
    %c0_i32_1 = arith.constant 0 : i32
    return %c0_i32, %c0_i32_0 : i32, i32
  }
  func.func @transform_3(%arg0: i32) -> (i32, i32) {
    %c0_i32 = arith.constant 0 : i32
    %c0_i32_0 = arith.constant 0 : i32
    %c0_i32_1 = arith.constant 0 : i32
    return %c0_i32, %c0_i32_0 : i32, i32
  }
  func.func @transform_4(%arg0: i32) -> (i32, i32) {
    %c0_i32 = arith.constant 0 : i32
    %c0_i32_0 = arith.constant 0 : i32
    %c0_i32_1 = arith.constant 0 : i32
    return %c0_i32, %c0_i32_0 : i32, i32
  }
  func.func @transform_5(%arg0: i32) -> (i32, i32, i32) {
    %c0_i32 = arith.constant 0 : i32
    %c0_i32_0 = arith.constant 0 : i32
    %c0_i32_1 = arith.constant 0 : i32
    return %arg0, %c0_i32, %c0_i32_0 : i32, i32, i32
  }
}

</mosaic_0001>

<llo_original>
// kernel: mha_forward.1
$region0: #{mha_forward.1}
  #allocation0 [shape = 'u32[]', space=smem, size = 0x4, offset = 0x4, fixed_abs, tag = 'smem constant byte address 0x4 - core index']
  #allocation1 [shape = 'u32[144,128]{1,0:T(1,128)}', space=vmem, size = 0x12000, scoped, tag = 'internal scratch']
  %s0 = inlined_call_operand.vmem [shape: f32[2,8,32], index: 0, kind: input, shape index: {}]
  %s1 = inlined_call_operand.vmem [shape: bf16[32,384], index: 1, kind: input, shape index: {}]
  %s2 = inlined_call_operand.vmem [shape: f32[1,384], index: 2, kind: input, shape index: {}]
  %s3 = inlined_call_operand.vmem [shape: bf16[128,32], index: 3, kind: input, shape index: {}]
  %s4 = inlined_call_operand.vmem [shape: f32[1,32], index: 4, kind: input, shape index: {}]
  %s5 = inlined_call_operand.hbm [shape: f32[2,8,32], index: 5, kind: output, shape index: {}]
  %s6 = sld [smem:[#allocation0]]
  $region53: #{mha_forward.1} parent=0
    _
  %s8 = ssub.s32 1, %s6
  %s9 = scalar_select 0, %s8, %s6
  $region1: #{mha_forward.1} parent=0
    #allocation2 [shape = 'u8[8192]{0}', space=vmem, size = 0x2000, scoped, tag = 'output window, operand 0']
    #allocation3 [shape = 's32[2]{0}', space=sflag, size = 0x8, scoped, tag = 'scoped memory for mha_forward.1']
    %10 = vsyncpa [#allocation3], 0
    %s11 = scalar_lea.sflag [#allocation3], 1
    %12 = vsyncpa %s11, 0
    loop: start=0, step=1, limit=4
    $region2: #{mha_forward.1} parent=1 // loop_pre_header
      _
    $region3: #{mha_forward.1} parent=1 // loop_header
      %s14 = sphi 0, %s18
      %p15 = scmp.ge.s32.totalorder %s14, 4
      %s24 = sphi 0, %s26
      %s27 = sphi 0, %s24
      %s28 = sphi 0, %s27
      %s44 = sphi 0, %s28
      %s48 = sphi 0, %s48
      %s50 = sphi 0, %s48
      %s51 = sphi 0, %s50
      %s65 = sphi 0, %s51
      %s69 = sphi 0, %s69
      %s71 = sphi 0, %s69
      %s72 = sphi 0, %s71
      %s86 = sphi 0, %s72
      %s90 = sphi 0, %s90
      %s92 = sphi 0, %s90
      %s93 = sphi 0, %s92
      %s107 = sphi 0, %s93
      %s111 = sphi 0, %s111
      %s113 = sphi 0, %s111
      %s114 = sphi 0, %s113
      %s128 = sphi 0, %s114
      %s134 = sphi 0, %s136
      %s137 = sphi 0, %s134
      %s138 = sphi 0, %s137
      %s154 = sphi 0, %s138
    $region4: #{mha_forward.1} parent=1 // loop_header_branch
      %17 = sbr.rel (%p15) target = $region8
    $region5: #{mha_forward.1} parent=1 // loop_body
      %s19 = ssub.s32 %s14, 1
      %s20 = ssub.s32 %s14, 2
      %s21 = sadd.s32 %s14, 1
      %s22 = ssub.s32 %s14, %s21
      %p23 = scmp.eq.s32.totalorder %s22, 0
      %s25 = sadd.s32 %s24, 1
      %s26 = scalar_select %p23, %s24, %s25
      %p29 = pneg %p23
      %p30 = scmp.eq.s32.totalorder %s14, 1
      %p31 = por %p29, %p30
      %p32 = scmp.ne.s32.totalorder %s24, %s27
      %p33 = scmp.eq.s32.totalorder %s14, 0
      %p34 = por %p32, %p33
      %p35 = scmp.ne.s32.totalorder %s24, %s27
      %p36 = scmp.eq.s32.totalorder %s19, 1
      %p37 = por %p35, %p36
      %p38 = scmp.ne.s32.totalorder %s27, %s28
      %p39 = scmp.eq.s32.totalorder %s19, 0
      %p40 = por %p38, %p39
      %p41 = scmp.ne.s32.totalorder %s27, %s28
      %p42 = scmp.eq.s32.totalorder %s20, 1
      %p43 = por %p41, %p42
      %p45 = scmp.ne.s32.totalorder %s28, %s44
      %p46 = scmp.eq.s32.totalorder %s20, 0
      %p47 = por %p45, %p46
      %s49 = sadd.s32 %s48, 1
      %p52 = scmp.eq.s32.totalorder %s14, 1
      %p53 = scmp.ne.s32.totalorder %s48, %s50
      %p54 = scmp.eq.s32.totalorder %s14, 0
      %p55 = por %p53, %p54
      %p56 = scmp.ne.s32.totalorder %s48, %s50
      %p57 = scmp.eq.s32.totalorder %s19, 1
      %p58 = por %p56, %p57
      %p59 = scmp.ne.s32.totalorder %s50, %s51
      %p60 = scmp.eq.s32.totalorder %s19, 0
      %p61 = por %p59, %p60
      %p62 = scmp.ne.s32.totalorder %s50, %s51
      %p63 = scmp.eq.s32.totalorder %s20, 1
      %p64 = por %p62, %p63
      %p66 = scmp.ne.s32.totalorder %s51, %s65
      %p67 = scmp.eq.s32.totalorder %s20, 0
      %p68 = por %p66, %p67
      %s70 = sadd.s32 %s69, 1
      %p73 = scmp.eq.s32.totalorder %s14, 1
      %p74 = scmp.ne.s32.totalorder %s69, %s71
      %p75 = scmp.eq.s32.totalorder %s14, 0
      %p76 = por %p74, %p75
      %p77 = scmp.ne.s32.totalorder %s69, %s71
      %p78 = scmp.eq.s32.totalorder %s19, 1
      %p79 = por %p77, %p78
      %p80 = scmp.ne.s32.totalorder %s71, %s72
      %p81 = scmp.eq.s32.totalorder %s19, 0
      %p82 = por %p80, %p81
      %p83 = scmp.ne.s32.totalorder %s71, %s72
      %p84 = scmp.eq.s32.totalorder %s20, 1
      %p85 = por %p83, %p84
      %p87 = scmp.ne.s32.totalorder %s72, %s86
      %p88 = scmp.eq.s32.totalorder %s20, 0
      %p89 = por %p87, %p88
      %s91 = sadd.s32 %s90, 1
      %p94 = scmp.eq.s32.totalorder %s14, 1
      %p95 = scmp.ne.s32.totalorder %s90, %s92
      %p96 = scmp.eq.s32.totalorder %s14, 0
      %p97 = por %p95, %p96
      %p98 = scmp.ne.s32.totalorder %s90, %s92
      %p99 = scmp.eq.s32.totalorder %s19, 1
      %p100 = por %p98, %p99
      %p101 = scmp.ne.s32.totalorder %s92, %s93
      %p102 = scmp.eq.s32.totalorder %s19, 0
      %p103 = por %p101, %p102
      %p104 = scmp.ne.s32.totalorder %s92, %s93
      %p105 = scmp.eq.s32.totalorder %s20, 1
      %p106 = por %p104, %p105
      %p108 = scmp.ne.s32.totalorder %s93, %s107
      %p109 = scmp.eq.s32.totalorder %s20, 0
      %p110 = por %p108, %p109
      %s112 = sadd.s32 %s111, 1
      %p115 = scmp.eq.s32.totalorder %s14, 1
      %p116 = scmp.ne.s32.totalorder %s111, %s113
      %p117 = scmp.eq.s32.totalorder %s14, 0
      %p118 = por %p116, %p117
      %p119 = scmp.ne.s32.totalorder %s111, %s113
      %p120 = scmp.eq.s32.totalorder %s19, 1
      %p121 = por %p119, %p120
      %p122 = scmp.ne.s32.totalorder %s113, %s114
      %p123 = scmp.eq.s32.totalorder %s19, 0
      %p124 = por %p122, %p123
      %p125 = scmp.ne.s32.totalorder %s113, %s114
      %p126 = scmp.eq.s32.totalorder %s20, 1
      %p127 = por %p125, %p126
      %p129 = scmp.ne.s32.totalorder %s114, %s128
      %p130 = scmp.eq.s32.totalorder %s20, 0
      %p131 = por %p129, %p130
      %s132 = ssub.s32 %s14, %s21
      %p133 = scmp.eq.s32.totalorder %s132, 0
      %s135 = sadd.s32 %s134, 1
      %s136 = scalar_select %p133, %s134, %s135
      %p139 = pneg %p133
      %p140 = scmp.eq.s32.totalorder %s14, 1
      %p141 = por %p139, %p140
      %p142 = scmp.ne.s32.totalorder %s134, %s137
      %p143 = scmp.eq.s32.totalorder %s14, 0
      %p144 = por %p142, %p143
      %p145 = scmp.ne.s32.totalorder %s134, %s137
      %p146 = scmp.eq.s32.totalorder %s19, 1
      %p147 = por %p145, %p146
      %p148 = scmp.ne.s32.totalorder %s137, %s138
      %p149 = scmp.eq.s32.totalorder %s19, 0
      %p150 = por %p148, %p149
      %p151 = scmp.ne.s32.totalorder %s137, %s138
      %p152 = scmp.eq.s32.totalorder %s20, 1
      %p153 = por %p151, %p152
      %p155 = scmp.ne.s32.totalorder %s138, %s154
      %p156 = scmp.eq.s32.totalorder %s20, 0
      %p157 = por %p155, %p156
      %p158 = scmp.le.s32.totalorder 1, %s14
      %p159 = scmp.lt.s32.totalorder %s14, 3
      %p160 = pnand %p158, %p159
      %p161 = pneg %p160
      // Predicated region
      $region9: #{mha_forward.1} parent=5 // pred_check
        _
      $region10: #{mha_forward.1} parent=5 // pred_check_branch
        %163 = sbr.rel (%p160) target = $region12
      $region11: #{mha_forward.1} parent=5 // pred_region
        %s164 = ssub.s32 %s14, 1
        // Predicated region
        $region13: #{mha_forward.1} parent=11 // pred_check
          %p165 = pneg %p61
        $region14: #{mha_forward.1} parent=11 // pred_check_branch
          %167 = sbr.rel (%p165) target = $region16
        $region15: #{mha_forward.1} parent=11 // pred_region
          _
        $region16: #{mha_forward.1} parent=11 // pred_fallthru
          _
        // Predicated region
        $region17: #{mha_forward.1} parent=11 // pred_check
          %p168 = pneg %p82
        $region18: #{mha_forward.1} parent=11 // pred_check_branch
          %170 = sbr.rel (%p168) target = $region20
        $region19: #{mha_forward.1} parent=11 // pred_region
          _
        $region20: #{mha_forward.1} parent=11 // pred_fallthru
          _
        // Predicated region
        $region21: #{mha_forward.1} parent=11 // pred_check
          %p171 = pneg %p103
        $region22: #{mha_forward.1} parent=11 // pred_check_branch
          %173 = sbr.rel (%p171) target = $region24
        $region23: #{mha_forward.1} parent=11 // pred_region
          _
        $region24: #{mha_forward.1} parent=11 // pred_fallthru
          _
        // Predicated region
        $region25: #{mha_forward.1} parent=11 // pred_check
          %p174 = pneg %p124
        $region26: #{mha_forward.1} parent=11 // pred_check_branch
          %176 = sbr.rel (%p174) target = $region28
        $region27: #{mha_forward.1} parent=11 // pred_region
          _
        $region28: #{mha_forward.1} parent=11 // pred_fallthru
          _
      $region12: #{mha_forward.1} parent=5 // pred_fallthru
        _
      %p177 = scmp.lt.s32.totalorder %s14, 2
      // Predicated region
      $region29: #{mha_forward.1} parent=5 // pred_check
        %p178 = pneg %p177
      $region30: #{mha_forward.1} parent=5 // pred_check_branch
        %180 = sbr.rel (%p178) target = $region32
      $region31: #{mha_forward.1} parent=5 // pred_region
        // Predicated region
        $region33: #{mha_forward.1} parent=31 // pred_check
          %p181 = pneg %p34
        $region34: #{mha_forward.1} parent=31 // pred_check_branch
          %183 = sbr.rel (%p181) target = $region36
        $region35: #{mha_forward.1} parent=31 // pred_region
          %p184 = scmp.lt.s32.totalorder %s14, 1
          %s185 = scalar_select %p184, %s14, 1
          %s186 = smul.addr %s185, 8
          %s187 = scalar_lea.vmem %s0, %s186
        $region36: #{mha_forward.1} parent=31 // pred_fallthru
          _
      $region32: #{mha_forward.1} parent=5 // pred_fallthru
        _
      %p188 = scmp.le.s32.totalorder 1, %s14
      %p189 = scmp.lt.s32.totalorder %s14, 3
      %p190 = pnand %p188, %p189
      %p191 = pneg %p190
      // Predicated region
      $region37: #{mha_forward.1} parent=5 // pred_check
        _
      $region38: #{mha_forward.1} parent=5 // pred_check_branch
        %193 = sbr.rel (%p190) target = $region40
      $region39: #{mha_forward.1} parent=5 // pred_region
        %s194 = ssub.s32 %s14, 1
        %p195 = scmp.lt.s32.totalorder %s19, 1
        %s196 = scalar_select %p195, %s19, 1
        %s197 = smul.addr %s196, 8
        %s198 = scalar_lea.vmem %s0, %s197
        %p199 = pneg %p40
        %p200 = pneg %p37
        %p201 = pneg %p61
        %p202 = pneg %p58
        %p203 = pneg %p82
        %p204 = pneg %p79
        %p205 = pneg %p103
        %p206 = pneg %p100
        %p207 = pneg %p124
        %p208 = pneg %p121
        %p209 = pneg %p150
        %p210 = pneg %p147
        %s211 = sand.u32 %s137, 1
        %s212 = scalar_lea.sflag [#allocation3], %s211
        %s213 = sand.u32 %s137, 1
        %s214 = smul.addr %s213, 8
        %s215 = scalar_lea.vmem [#allocation2], %s214
        %p216 = scmp.lt.s32.totalorder %s19, 1
        %s217 = scalar_select %p216, %s19, 1
        %s218 = smul.addr %s217, 8
        %s219 = scalar_lea.vmem %s0, %s218
        %v221 = vld [vmem:[%s219] sm:$0xff]
        %v222 = vpack.c.bf16 %v221, %v221
        %v223 = vld [vmem:[%s1] sm:$0xff]
        %v224 = vld [vmem:[%s1 + $0x8] sm:$0xf]
        %v225 = vld [vmem:[%s1 + $0xc] sm:$0xff]
        %v226 = vld [vmem:[%s1 + $0x14] sm:$0xf]
        %v227 = vld [vmem:[%s1 + $0x18] sm:$0xff]
        %v228 = vld [vmem:[%s1 + $0x20] sm:$0xf]
        %v229 = vld [vmem:[%s1 + $0x24] sm:$0xff]
        %v230 = vld [vmem:[%s1 + $0x2c] sm:$0xf]
        %v231 = vld [vmem:[%s2] sm:$0x7]
        %v233 = vlaneseq
        %v234 = vshrl.u32 %v233, 7
        %v235 = vsub.s32 0, %v234
        %v236 = vrot.slane %v231, %v235
        %v237 = vlaneseq
        %v238 = vshrl.u32 %v237, 7
        %v239 = vsub.s32 1, %v238
        %v240 = vrot.slane %v231, %v239
        %v241 = vlaneseq
        %v242 = vshrl.u32 %v241, 7
        %v243 = vsub.s32 2, %v242
        %v244 = vrot.slane %v231, %v243
        %v256 = vunpack.c.l.b16 %v223
        %v257 = vunpack.c.h.b16 %v223
        %v258 = vunpack.c.l.b16 %v224
        %v259 = vunpack.c.l.b16 %v225
        %v260 = vunpack.c.h.b16 %v225
        %v261 = vunpack.c.l.b16 %v226
        %v262 = vunpack.c.l.b16 %v227
        %v263 = vunpack.c.h.b16 %v227
        %v264 = vunpack.c.l.b16 %v228
        %v265 = vunpack.c.l.b16 %v229
        %v266 = vunpack.c.h.b16 %v229
        %v267 = vunpack.c.l.b16 %v230
        %v268 = vpack.c.b16 %v259, %v256
        %v269 = vpack.c.b16 %v260, %v257
        %v270 = vpack.c.b16 %v261, %v258
        %v271 = vpack.c.b16 %v265, %v262
        %v272 = vpack.c.b16 %v266, %v263
        %v273 = vpack.c.b16 %v267, %v264
        %vm280 = vcmask 261120
        %v282 = vsel %vm280, %v222, 0
        %284 = vmatprep.subr.bf16.mxu0 %v269
        %285 = vmatpush1.bf16.msra.mxu0 %v268
        %286 = vmatprep.subr.bf16.mxu0 %v272
        %287 = vmatpush1.bf16.msra.mxu0 %v271
        %288 = vmatprep.subr.bf16.mxu0 0
        %289 = vmatpush1.bf16.msra.mxu0 0
        %290 = vmatprep.subr.bf16.mxu0 0
        %291 = vmatpush1.bf16.msra.mxu0 0
        %292 = vmatprep.subr.bf16.mxu0 0
        %293 = vmatpush1.bf16.msra.mxu0 0
        %294 = vmatprep.subr.bf16.mxu0 0
        %295 = vmatpush1.bf16.msra.mxu0 0
        %296 = vmatprep.subr.bf16.mxu0 0
        %297 = vmatpush1.bf16.msra.mxu0 0
        %298 = vmatprep.subr.bf16.mxu0 0
        %299 = vmatpush1.bf16.msra.mxu0 0
        %300 = vmatprep.subr.bf16.mxu0 0
        %301 = vmatpush1.bf16.msra.mxu0 0
        %302 = vmatprep.subr.bf16.mxu0 0
        %303 = vmatpush1.bf16.msra.mxu0 0
        %304 = vmatprep.subr.bf16.mxu0 0
        %305 = vmatpush1.bf16.msra.mxu0 0
        %306 = vmatprep.subr.bf16.mxu0 0
        %307 = vmatpush1.bf16.msra.mxu0 0
        %308 = vmatprep.subr.bf16.mxu0 0
        %309 = vmatpush1.bf16.msra.mxu0 0
        %310 = vmatprep.subr.bf16.mxu0 0
        %311 = vmatpush1.bf16.msra.mxu0 0
        %312 = vmatprep.subr.bf16.mxu0 0
        %313 = vmatpush1.bf16.msra.mxu0 0
        %314 = vmatprep.subr.bf16.mxu0 0
        %315 = vmatpush1.bf16.msra.mxu0 0
        %316 = vmatprep.mubr.bf16.mxu0 0
        %317 = vmatmul.mubr.bf16.gmra.mrb[0].mxu0 %v282
        %v318 = vpop.f32.mrb[0].mxu0
        %v319 = vadd.f32 %v236, %v318
        %v320 = vpop.f32.mrb[0].mxu0
        %v321 = vadd.f32 %v240, %v320
        %v322 = vpop.f32.mrb[0].mxu0
        %v323 = vpop.f32.mrb[0].mxu0
        %324 = vdwg.mxu0
        %325 = vmatprep.subr.bf16.mxu0 0
        %326 = vmatpush1.bf16.msra.mxu0 %v270
        %327 = vmatprep.subr.bf16.mxu0 0
        %328 = vmatpush1.bf16.msra.mxu0 %v273
        %329 = vmatprep.subr.bf16.mxu0 0
        %330 = vmatpush1.bf16.msra.mxu0 0
        %331 = vmatprep.subr.bf16.mxu0 0
        %332 = vmatpush1.bf16.msra.mxu0 0
        %333 = vmatprep.subr.bf16.mxu0 0
        %334 = vmatpush1.bf16.msra.mxu0 0
        %335 = vmatprep.subr.bf16.mxu0 0
        %336 = vmatpush1.bf16.msra.mxu0 0
        %337 = vmatprep.subr.bf16.mxu0 0
        %338 = vmatpush1.bf16.msra.mxu0 0
        %339 = vmatprep.subr.bf16.mxu0 0
        %340 = vmatpush1.bf16.msra.mxu0 0
        %341 = vmatprep.subr.bf16.mxu0 0
        %342 = vmatpush1.bf16.msra.mxu0 0
        %343 = vmatprep.subr.bf16.mxu0 0
        %344 = vmatpush1.bf16.msra.mxu0 0
        %345 = vmatprep.subr.bf16.mxu0 0
        %346 = vmatpush1.bf16.msra.mxu0 0
        %347 = vmatprep.subr.bf16.mxu0 0
        %348 = vmatpush1.bf16.msra.mxu0 0
        %349 = vmatprep.subr.bf16.mxu0 0
        %350 = vmatpush1.bf16.msra.mxu0 0
        %351 = vmatprep.subr.bf16.mxu0 0
        %352 = vmatpush1.bf16.msra.mxu0 0
        %353 = vmatprep.subr.bf16.mxu0 0
        %354 = vmatpush1.bf16.msra.mxu0 0
        %355 = vmatprep.subr.bf16.mxu0 0
        %356 = vmatpush1.bf16.msra.mxu0 0
        %357 = vmatprep.mubr.bf16.mxu0 0
        %358 = vmatmul.mubr.bf16.gmra.mrb[0].mxu0 %v282
        %v359 = vpop.f32.mrb[0].mxu0
        %v360 = vadd.f32 %v244, %v359
        %v361 = vpop.f32.mrb[0].mxu0
        %v362 = vpop.f32.mrb[0].mxu0
        %v363 = vpop.f32.mrb[0].mxu0
        %364 = vdwg.mxu0
        %v365 = vpack.c.bf16 %v319, %v319
        %v366 = vpack.c.bf16 %v321, %v321
        %v368 = vsel %vm280, %v365, 0
        %v371 = vsel %vm280, %v366, 0
        %373 = vmatprep.subr.bf16.mxu0 0
        %374 = vmatpush1.bf16.xpose.msra.mxu0 %v371
        %375 = vmatprep.subr.bf16.mxu0 0
        %376 = vmatpush1.bf16.xpose.msra.mxu0 0
        %377 = vmatprep.subr.bf16.mxu0 0
        %378 = vmatpush1.bf16.xpose.msra.mxu0 0
        %379 = vmatprep.subr.bf16.mxu0 0
        %380 = vmatpush1.bf16.xpose.msra.mxu0 0
        %381 = vmatprep.subr.bf16.mxu0 0
        %382 = vmatpush1.bf16.xpose.msra.mxu0 0
        %383 = vmatprep.subr.bf16.mxu0 0
        %384 = vmatpush1.bf16.xpose.msra.mxu0 0
        %385 = vmatprep.subr.bf16.mxu0 0
        %386 = vmatpush1.bf16.xpose.msra.mxu0 0
        %387 = vmatprep.subr.bf16.mxu0 0
        %388 = vmatpush1.bf16.xpose.msra.mxu0 0
        %389 = vmatprep.subr.bf16.mxu0 0
        %390 = vmatpush1.bf16.xpose.msra.mxu0 0
        %391 = vmatprep.subr.bf16.mxu0 0
        %392 = vmatpush1.bf16.xpose.msra.mxu0 0
        %393 = vmatprep.subr.bf16.mxu0 0
        %394 = vmatpush1.bf16.xpose.msra.mxu0 0
        %395 = vmatprep.subr.bf16.mxu0 0
        %396 = vmatpush1.bf16.xpose.msra.mxu0 0
        %397 = vmatprep.subr.bf16.mxu0 0
        %398 = vmatpush1.bf16.xpose.msra.mxu0 0
        %399 = vmatprep.subr.bf16.mxu0 0
        %400 = vmatpush1.bf16.xpose.msra.mxu0 0
        %401 = vmatprep.subr.bf16.mxu0 0
        %402 = vmatpush1.bf16.xpose.msra.mxu0 0
        %403 = vmatprep.subr.bf16.mxu0 0
        %404 = vmatpush1.bf16.xpose.msra.mxu0 0
        %405 = vmatprep.mubr.bf16.mxu0 0
        %406 = vmatmul.mubr.bf16.gmra.mrb[0].mxu0 %v368
        %v407 = vpop.f32.mrb[0].mxu0
        %v408 = vadd.f32 0.0, %v407
        %v409 = vpop.f32.mrb[0].mxu0
        %v410 = vpop.f32.mrb[0].mxu0
        %v411 = vpop.f32.mrb[0].mxu0
        %412 = vdwg.mxu0
        %vm413 = vcmask 64512
        %v414 = vsel %vm413, %v408, -inf
        %415 = vmax.xlane.f32.xlu0 %v414
        %v416 = vpop.xlane.xlu0 %415
        %v417 = vsub.f32 %v408, %v416
        %v418 = vmul.f32 %v417, 1.442695
        %v419 = vpow.pop %v418
        %v420 = vsel %vm413, %v419, 0.0
        %421 = vadd.xlane.f32.xlu0 %v420
        %v422 = vpop.xlane.xlu0 %421
        %v423 = vpack.c.bf16 %v419, %v419
        %v424 = vpack.c.bf16 %v360, %v360
        %v426 = vsel %vm413, %v423, 0
        %vm428 = vcmask 1043456
        %v430 = vsel %vm428, %v424, 0
        %432 = vmatprep.subr.bf16.mxu0 0
        %433 = vmatpush1.bf16.msra.mxu0 %v430
        %434 = vmatprep.subr.bf16.mxu0 0
        %435 = vmatpush1.bf16.msra.mxu0 0
        %436 = vmatprep.subr.bf16.mxu0 0
        %437 = vmatpush1.bf16.msra.mxu0 0
        %438 = vmatprep.subr.bf16.mxu0 0
        %439 = vmatpush1.bf16.msra.mxu0 0
        %440 = vmatprep.subr.bf16.mxu0 0
        %441 = vmatpush1.bf16.msra.mxu0 0
        %442 = vmatprep.subr.bf16.mxu0 0
        %443 = vmatpush1.bf16.msra.mxu0 0
        %444 = vmatprep.subr.bf16.mxu0 0
        %445 = vmatpush1.bf16.msra.mxu0 0
        %446 = vmatprep.subr.bf16.mxu0 0
        %447 = vmatpush1.bf16.msra.mxu0 0
        %448 = vmatprep.subr.bf16.mxu0 0
        %449 = vmatpush1.bf16.msra.mxu0 0
        %450 = vmatprep.subr.bf16.mxu0 0
        %451 = vmatpush1.bf16.msra.mxu0 0
        %452 = vmatprep.subr.bf16.mxu0 0
        %453 = vmatpush1.bf16.msra.mxu0 0
        %454 = vmatprep.subr.bf16.mxu0 0
        %455 = vmatpush1.bf16.msra.mxu0 0
        %456 = vmatprep.subr.bf16.mxu0 0
        %457 = vmatpush1.bf16.msra.mxu0 0
        %458 = vmatprep.subr.bf16.mxu0 0
        %459 = vmatpush1.bf16.msra.mxu0 0
        %460 = vmatprep.subr.bf16.mxu0 0
        %461 = vmatpush1.bf16.msra.mxu0 0
        %462 = vmatprep.subr.bf16.mxu0 0
        %463 = vmatpush1.bf16.msra.mxu0 0
        %464 = vmatprep.mubr.bf16.mxu0 0
        %465 = vmatmul.mubr.bf16.gmra.mrb[0].mxu0 %v426
        %v466 = vpop.f32.mrb[0].mxu0
        %v467 = vadd.f32 0.0, %v466
        %v468 = vpop.f32.mrb[0].mxu0
        %v469 = vpop.f32.mrb[0].mxu0
        %v470 = vpop.f32.mrb[0].mxu0
        %471 = vdwg.mxu0
        %v472 = vrcp.pop %v422
        %v473 = vmul.f32 %v467, %v472
        %v474 = vpack.c.bf16 %v473, %v473
        %476 = vrot.lane.b32.xlu0 %v365, 96
        %v477 = vpop.permute.xlu0 %476
        %479 = vrot.lane.b32.xlu0 %v366, 96
        %v480 = vpop.permute.xlu0 %479
        %v482 = vsel %vm280, %v477, 0
        %v485 = vsel %vm280, %v480, 0
        %487 = vmatprep.subr.bf16.mxu0 0
        %488 = vmatpush1.bf16.xpose.msra.mxu0 %v485
        %489 = vmatprep.subr.bf16.mxu0 0
        %490 = vmatpush1.bf16.xpose.msra.mxu0 0
        %491 = vmatprep.subr.bf16.mxu0 0
        %492 = vmatpush1.bf16.xpose.msra.mxu0 0
        %493 = vmatprep.subr.bf16.mxu0 0
        %494 = vmatpush1.bf16.xpose.msra.mxu0 0
        %495 = vmatprep.subr.bf16.mxu0 0
        %496 = vmatpush1.bf16.xpose.msra.mxu0 0
        %497 = vmatprep.subr.bf16.mxu0 0
        %498 = vmatpush1.bf16.xpose.msra.mxu0 0
        %499 = vmatprep.subr.bf16.mxu0 0
        %500 = vmatpush1.bf16.xpose.msra.mxu0 0
        %501 = vmatprep.subr.bf16.mxu0 0
        %502 = vmatpush1.bf16.xpose.msra.mxu0 0
        %503 = vmatprep.subr.bf16.mxu0 0
        %504 = vmatpush1.bf16.xpose.msra.mxu0 0
        %505 = vmatprep.subr.bf16.mxu0 0
        %506 = vmatpush1.bf16.xpose.msra.mxu0 0
        %507 = vmatprep.subr.bf16.mxu0 0
        %508 = vmatpush1.bf16.xpose.msra.mxu0 0
        %509 = vmatprep.subr.bf16.mxu0 0
        %510 = vmatpush1.bf16.xpose.msra.mxu0 0
        %511 = vmatprep.subr.bf16.mxu0 0
        %512 = vmatpush1.bf16.xpose.msra.mxu0 0
        %513 = vmatprep.subr.bf16.mxu0 0
        %514 = vmatpush1.bf16.xpose.msra.mxu0 0
        %515 = vmatprep.subr.bf16.mxu0 0
        %516 = vmatpush1.bf16.xpose.msra.mxu0 0
        %517 = vmatprep.subr.bf16.mxu0 0
        %518 = vmatpush1.bf16.xpose.msra.mxu0 0
        %519 = vmatprep.mubr.bf16.mxu0 0
        %520 = vmatmul.mubr.bf16.gmra.mrb[0].mxu0 %v482
        %v521 = vpop.f32.mrb[0].mxu0
        %v522 = vadd.f32 0.0, %v521
        %v523 = vpop.f32.mrb[0].mxu0
        %v524 = vpop.f32.mrb[0].mxu0
        %v525 = vpop.f32.mrb[0].mxu0
        %526 = vdwg.mxu0
        %v527 = vsel %vm413, %v522, -inf
        %528 = vmax.xlane.f32.xlu0 %v527
        %v529 = vpop.xlane.xlu0 %528
        %v530 = vsub.f32 %v522, %v529
        %v531 = vmul.f32 %v530, 1.442695
        %v532 = vpow.pop %v531
        %v533 = vsel %vm413, %v532, 0.0
        %534 = vadd.xlane.f32.xlu0 %v533
        %v535 = vpop.xlane.xlu0 %534
        %v536 = vpack.c.bf16 %v532, %v532
        %538 = vrot.lane.b32.xlu0 %v424, 96
        %v539 = vpop.permute.xlu0 %538
        %v541 = vsel %vm413, %v536, 0
        %v544 = vsel %vm428, %v539, 0
        %546 = vmatprep.subr.bf16.mxu0 0
        %547 = vmatpush1.bf16.msra.mxu0 %v544
        %548 = vmatprep.subr.bf16.mxu0 0
        %549 = vmatpush1.bf16.msra.mxu0 0
        %550 = vmatprep.subr.bf16.mxu0 0
        %551 = vmatpush1.bf16.msra.mxu0 0
        %552 = vmatprep.subr.bf16.mxu0 0
        %553 = vmatpush1.bf16.msra.mxu0 0
        %554 = vmatprep.subr.bf16.mxu0 0
        %555 = vmatpush1.bf16.msra.mxu0 0
        %556 = vmatprep.subr.bf16.mxu0 0
        %557 = vmatpush1.bf16.msra.mxu0 0
        %558 = vmatprep.subr.bf16.mxu0 0
        %559 = vmatpush1.bf16.msra.mxu0 0
        %560 = vmatprep.subr.bf16.mxu0 0
        %561 = vmatpush1.bf16.msra.mxu0 0
        %562 = vmatprep.subr.bf16.mxu0 0
        %563 = vmatpush1.bf16.msra.mxu0 0
        %564 = vmatprep.subr.bf16.mxu0 0
        %565 = vmatpush1.bf16.msra.mxu0 0
        %566 = vmatprep.subr.bf16.mxu0 0
        %567 = vmatpush1.bf16.msra.mxu0 0
        %568 = vmatprep.subr.bf16.mxu0 0
        %569 = vmatpush1.bf16.msra.mxu0 0
        %570 = vmatprep.subr.bf16.mxu0 0
        %571 = vmatpush1.bf16.msra.mxu0 0
        %572 = vmatprep.subr.bf16.mxu0 0
        %573 = vmatpush1.bf16.msra.mxu0 0
        %574 = vmatprep.subr.bf16.mxu0 0
        %575 = vmatpush1.bf16.msra.mxu0 0
        %576 = vmatprep.subr.bf16.mxu0 0
        %577 = vmatpush1.bf16.msra.mxu0 0
        %578 = vmatprep.mubr.bf16.mxu0 0
        %579 = vmatmul.mubr.bf16.gmra.mrb[0].mxu0 %v541
        %v580 = vpop.f32.mrb[0].mxu0
        %v581 = vadd.f32 0.0, %v580
        %v582 = vpop.f32.mrb[0].mxu0
        %v583 = vpop.f32.mrb[0].mxu0
        %v584 = vpop.f32.mrb[0].mxu0
        %585 = vdwg.mxu0
        %v586 = vrcp.pop %v535
        %v587 = vmul.f32 %v581, %v586
        %v588 = vpack.c.bf16 %v587, %v587
        %589 = vrot.lane.b32.xlu0 %v365, 64
        %v590 = vpop.permute.xlu0 %589
        %591 = vrot.lane.b32.xlu0 %v366, 64
        %v592 = vpop.permute.xlu0 %591
        %v594 = vsel %vm280, %v590, 0
        %v597 = vsel %vm280, %v592, 0
        %599 = vmatprep.subr.bf16.mxu0 0
        %600 = vmatpush1.bf16.xpose.msra.mxu0 %v597
        %601 = vmatprep.subr.bf16.mxu0 0
        %602 = vmatpush1.bf16.xpose.msra.mxu0 0
        %603 = vmatprep.subr.bf16.mxu0 0
        %604 = vmatpush1.bf16.xpose.msra.mxu0 0
        %605 = vmatprep.subr.bf16.mxu0 0
        %606 = vmatpush1.bf16.xpose.msra.mxu0 0
        %607 = vmatprep.subr.bf16.mxu0 0
        %608 = vmatpush1.bf16.xpose.msra.mxu0 0
        %609 = vmatprep.subr.bf16.mxu0 0
        %610 = vmatpush1.bf16.xpose.msra.mxu0 0
        %611 = vmatprep.subr.bf16.mxu0 0
        %612 = vmatpush1.bf16.xpose.msra.mxu0 0
        %613 = vmatprep.subr.bf16.mxu0 0
        %614 = vmatpush1.bf16.xpose.msra.mxu0 0
        %615 = vmatprep.subr.bf16.mxu0 0
        %616 = vmatpush1.bf16.xpose.msra.mxu0 0
        %617 = vmatprep.subr.bf16.mxu0 0
        %618 = vmatpush1.bf16.xpose.msra.mxu0 0
        %619 = vmatprep.subr.bf16.mxu0 0
        %620 = vmatpush1.bf16.xpose.msra.mxu0 0
        %621 = vmatprep.subr.bf16.mxu0 0
        %622 = vmatpush1.bf16.xpose.msra.mxu0 0
        %623 = vmatprep.subr.bf16.mxu0 0
        %624 = vmatpush1.bf16.xpose.msra.mxu0 0
        %625 = vmatprep.subr.bf16.mxu0 0
        %626 = vmatpush1.bf16.xpose.msra.mxu0 0
        %627 = vmatprep.subr.bf16.mxu0 0
        %628 = vmatpush1.bf16.xpose.msra.mxu0 0
        %629 = vmatprep.subr.bf16.mxu0 0
        %630 = vmatpush1.bf16.xpose.msra.mxu0 0
        %631 = vmatprep.mubr.bf16.mxu0 0
        %632 = vmatmul.mubr.bf16.gmra.mrb[0].mxu0 %v594
        %v633 = vpop.f32.mrb[0].mxu0
        %v634 = vadd.f32 0.0, %v633
        %v635 = vpop.f32.mrb[0].mxu0
        %v636 = vpop.f32.mrb[0].mxu0
        %v637 = vpop.f32.mrb[0].mxu0
        %638 = vdwg.mxu0
        %v639 = vsel %vm413, %v634, -inf
        %640 = vmax.xlane.f32.xlu0 %v639
        %v641 = vpop.xlane.xlu0 %640
        %v642 = vsub.f32 %v634, %v641
        %v643 = vmul.f32 %v642, 1.442695
        %v644 = vpow.pop %v643
        %v645 = vsel %vm413, %v644, 0.0
        %646 = vadd.xlane.f32.xlu0 %v645
        %v647 = vpop.xlane.xlu0 %646
        %v648 = vpack.c.bf16 %v644, %v644
        %649 = vrot.lane.b32.xlu0 %v424, 64
        %v650 = vpop.permute.xlu0 %649
        %v652 = vsel %vm413, %v648, 0
        %v655 = vsel %vm428, %v650, 0
        %657 = vmatprep.subr.bf16.mxu0 0
        %658 = vmatpush1.bf16.msra.mxu0 %v655
        %659 = vmatprep.subr.bf16.mxu0 0
        %660 = vmatpush1.bf16.msra.mxu0 0
        %661 = vmatprep.subr.bf16.mxu0 0
        %662 = vmatpush1.bf16.msra.mxu0 0
        %663 = vmatprep.subr.bf16.mxu0 0
        %664 = vmatpush1.bf16.msra.mxu0 0
        %665 = vmatprep.subr.bf16.mxu0 0
        %666 = vmatpush1.bf16.msra.mxu0 0
        %667 = vmatprep.subr.bf16.mxu0 0
        %668 = vmatpush1.bf16.msra.mxu0 0
        %669 = vmatprep.subr.bf16.mxu0 0
        %670 = vmatpush1.bf16.msra.mxu0 0
        %671 = vmatprep.subr.bf16.mxu0 0
        %672 = vmatpush1.bf16.msra.mxu0 0
        %673 = vmatprep.subr.bf16.mxu0 0
        %674 = vmatpush1.bf16.msra.mxu0 0
        %675 = vmatprep.subr.bf16.mxu0 0
        %676 = vmatpush1.bf16.msra.mxu0 0
        %677 = vmatprep.subr.bf16.mxu0 0
        %678 = vmatpush1.bf16.msra.mxu0 0
        %679 = vmatprep.subr.bf16.mxu0 0
        %680 = vmatpush1.bf16.msra.mxu0 0
        %681 = vmatprep.subr.bf16.mxu0 0
        %682 = vmatpush1.bf16.msra.mxu0 0
        %683 = vmatprep.subr.bf16.mxu0 0
        %684 = vmatpush1.bf16.msra.mxu0 0
        %685 = vmatprep.subr.bf16.mxu0 0
        %686 = vmatpush1.bf16.msra.mxu0 0
        %687 = vmatprep.subr.bf16.mxu0 0
        %688 = vmatpush1.bf16.msra.mxu0 0
        %689 = vmatprep.mubr.bf16.mxu0 0
        %690 = vmatmul.mubr.bf16.gmra.mrb[0].mxu0 %v652
        %v691 = vpop.f32.mrb[0].mxu0
        %v692 = vadd.f32 0.0, %v691
        %v693 = vpop.f32.mrb[0].mxu0
        %v694 = vpop.f32.mrb[0].mxu0
        %v695 = vpop.f32.mrb[0].mxu0
        %696 = vdwg.mxu0
        %v697 = vrcp.pop %v647
        %v698 = vmul.f32 %v692, %v697
        %v699 = vpack.c.bf16 %v698, %v698
        %700 = vrot.lane.b32.xlu0 %v365, 32
        %v701 = vpop.permute.xlu0 %700
        %702 = vrot.lane.b32.xlu0 %v366, 32
        %v703 = vpop.permute.xlu0 %702
        %v705 = vsel %vm280, %v701, 0
        %v708 = vsel %vm280, %v703, 0
        %710 = vmatprep.subr.bf16.mxu0 0
        %711 = vmatpush1.bf16.xpose.msra.mxu0 %v708
        %712 = vmatprep.subr.bf16.mxu0 0
        %713 = vmatpush1.bf16.xpose.msra.mxu0 0
        %714 = vmatprep.subr.bf16.mxu0 0
        %715 = vmatpush1.bf16.xpose.msra.mxu0 0
        %716 = vmatprep.subr.bf16.mxu0 0
        %717 = vmatpush1.bf16.xpose.msra.mxu0 0
        %718 = vmatprep.subr.bf16.mxu0 0
        %719 = vmatpush1.bf16.xpose.msra.mxu0 0
        %720 = vmatprep.subr.bf16.mxu0 0
        %721 = vmatpush1.bf16.xpose.msra.mxu0 0
        %722 = vmatprep.subr.bf16.mxu0 0
        %723 = vmatpush1.bf16.xpose.msra.mxu0 0
        %724 = vmatprep.subr.bf16.mxu0 0
        %725 = vmatpush1.bf16.xpose.msra.mxu0 0
        %726 = vmatprep.subr.bf16.mxu0 0
        %727 = vmatpush1.bf16.xpose.msra.mxu0 0
        %728 = vmatprep.subr.bf16.mxu0 0
        %729 = vmatpush1.bf16.xpose.msra.mxu0 0
        %730 = vmatprep.subr.bf16.mxu0 0
        %731 = vmatpush1.bf16.xpose.msra.mxu0 0
        %732 = vmatprep.subr.bf16.mxu0 0
        %733 = vmatpush1.bf16.xpose.msra.mxu0 0
        %734 = vmatprep.subr.bf16.mxu0 0
        %735 = vmatpush1.bf16.xpose.msra.mxu0 0
        %736 = vmatprep.subr.bf16.mxu0 0
        %737 = vmatpush1.bf16.xpose.msra.mxu0 0
        %738 = vmatprep.subr.bf16.mxu0 0
        %739 = vmatpush1.bf16.xpose.msra.mxu0 0
        %740 = vmatprep.subr.bf16.mxu0 0
        %741 = vmatpush1.bf16.xpose.msra.mxu0 0
        %742 = vmatprep.mubr.bf16.mxu0 0
        %743 = vmatmul.mubr.bf16.gmra.mrb[0].mxu0 %v705
        %v744 = vpop.f32.mrb[0].mxu0
        %v745 = vadd.f32 0.0, %v744
        %v746 = vpop.f32.mrb[0].mxu0
        %v747 = vpop.f32.mrb[0].mxu0
        %v748 = vpop.f32.mrb[0].mxu0
        %749 = vdwg.mxu0
        %v750 = vsel %vm413, %v745, -inf
        %751 = vmax.xlane.f32.xlu0 %v750
        %v752 = vpop.xlane.xlu0 %751
        %v753 = vsub.f32 %v745, %v752
        %v754 = vmul.f32 %v753, 1.442695
        %v755 = vpow.pop %v754
        %v756 = vsel %vm413, %v755, 0.0
        %757 = vadd.xlane.f32.xlu0 %v756
        %v758 = vpop.xlane.xlu0 %757
        %v759 = vpack.c.bf16 %v755, %v755
        %760 = vrot.lane.b32.xlu0 %v424, 32
        %v761 = vpop.permute.xlu0 %760
        %v763 = vsel %vm413, %v759, 0
        %v766 = vsel %vm428, %v761, 0
        %768 = vmatprep.subr.bf16.mxu0 0
        %769 = vmatpush1.bf16.msra.mxu0 %v766
        %770 = vmatprep.subr.bf16.mxu0 0
        %771 = vmatpush1.bf16.msra.mxu0 0
        %772 = vmatprep.subr.bf16.mxu0 0
        %773 = vmatpush1.bf16.msra.mxu0 0
        %774 = vmatprep.subr.bf16.mxu0 0
        %775 = vmatpush1.bf16.msra.mxu0 0
        %776 = vmatprep.subr.bf16.mxu0 0
        %777 = vmatpush1.bf16.msra.mxu0 0
        %778 = vmatprep.subr.bf16.mxu0 0
        %779 = vmatpush1.bf16.msra.mxu0 0
        %780 = vmatprep.subr.bf16.mxu0 0
        %781 = vmatpush1.bf16.msra.mxu0 0
        %782 = vmatprep.subr.bf16.mxu0 0
        %783 = vmatpush1.bf16.msra.mxu0 0
        %784 = vmatprep.subr.bf16.mxu0 0
        %785 = vmatpush1.bf16.msra.mxu0 0
        %786 = vmatprep.subr.bf16.mxu0 0
        %787 = vmatpush1.bf16.msra.mxu0 0
        %788 = vmatprep.subr.bf16.mxu0 0
        %789 = vmatpush1.bf16.msra.mxu0 0
        %790 = vmatprep.subr.bf16.mxu0 0
        %791 = vmatpush1.bf16.msra.mxu0 0
        %792 = vmatprep.subr.bf16.mxu0 0
        %793 = vmatpush1.bf16.msra.mxu0 0
        %794 = vmatprep.subr.bf16.mxu0 0
        %795 = vmatpush1.bf16.msra.mxu0 0
        %796 = vmatprep.subr.bf16.mxu0 0
        %797 = vmatpush1.bf16.msra.mxu0 0
        %798 = vmatprep.subr.bf16.mxu0 0
        %799 = vmatpush1.bf16.msra.mxu0 0
        %800 = vmatprep.mubr.bf16.mxu0 0
        %801 = vmatmul.mubr.bf16.gmra.mrb[0].mxu0 %v763
        %v802 = vpop.f32.mrb[0].mxu0
        %v803 = vadd.f32 0.0, %v802
        %v804 = vpop.f32.mrb[0].mxu0
        %v805 = vpop.f32.mrb[0].mxu0
        %v806 = vpop.f32.mrb[0].mxu0
        %807 = vdwg.mxu0
        %v808 = vrcp.pop %v758
        %v809 = vmul.f32 %v803, %v808
        %v810 = vpack.c.bf16 %v809, %v809
        %812 = vrot.lane.b32.xlu0 %v588, 32
        %v813 = vpop.permute.xlu0 %812
        %815 = vrot.lane.b32.xlu0 %v699, 64
        %v816 = vpop.permute.xlu0 %815
        %818 = vrot.lane.b32.xlu0 %v810, 96
        %v819 = vpop.permute.xlu0 %818
        %v822 = vsel %vm280, %v474, %v813
        %vm823 = vcmask 523264
        %v825 = vsel %vm823, %v822, %v816
        %vm826 = vcmask 785408
        %v828 = vsel %vm826, %v825, %v819
        %v830 = vld [vmem:[%s3] sm:$0xf]
        %v831 = vld [vmem:[%s3 + $0x4] sm:$0xf]
        %v832 = vld [vmem:[%s3 + $0x8] sm:$0xf]
        %v833 = vld [vmem:[%s3 + $0xc] sm:$0xf]
        %v834 = vld [vmem:[%s3 + $0x10] sm:$0xf]
        %v835 = vld [vmem:[%s3 + $0x14] sm:$0xf]
        %v836 = vld [vmem:[%s3 + $0x18] sm:$0xf]
        %v837 = vld [vmem:[%s3 + $0x1c] sm:$0xf]
        %v838 = vld [vmem:[%s3 + $0x20] sm:$0xf]
        %v839 = vld [vmem:[%s3 + $0x24] sm:$0xf]
        %v840 = vld [vmem:[%s3 + $0x28] sm:$0xf]
        %v841 = vld [vmem:[%s3 + $0x2c] sm:$0xf]
        %v842 = vld [vmem:[%s3 + $0x30] sm:$0xf]
        %v843 = vld [vmem:[%s3 + $0x34] sm:$0xf]
        %v844 = vld [vmem:[%s3 + $0x38] sm:$0xf]
        %v845 = vld [vmem:[%s3 + $0x3c] sm:$0xf]
        %v846 = vld [vmem:[%s4] sm:$0x1]
        %v848 = vlaneseq
        %v849 = vshrl.u32 %v848, 7
        %v850 = vsub.s32 0, %v849
        %v851 = vrot.slane %v846, %v850
        %v869 = vunpack.c.l.b16 %v830
        %v870 = vunpack.c.l.b16 %v831
        %v871 = vunpack.c.l.b16 %v832
        %v872 = vunpack.c.l.b16 %v833
        %v873 = vunpack.c.l.b16 %v834
        %v874 = vunpack.c.l.b16 %v835
        %v875 = vunpack.c.l.b16 %v836
        %v876 = vunpack.c.l.b16 %v837
        %v877 = vunpack.c.l.b16 %v838
        %v878 = vunpack.c.l.b16 %v839
        %v879 = vunpack.c.l.b16 %v840
        %v880 = vunpack.c.l.b16 %v841
        %v881 = vunpack.c.l.b16 %v842
        %v882 = vunpack.c.l.b16 %v843
        %v883 = vunpack.c.l.b16 %v844
        %v884 = vunpack.c.l.b16 %v845
        %v885 = vpack.c.b16 %v870, %v869
        %v886 = vpack.c.b16 %v872, %v871
        %v887 = vpack.c.b16 %v874, %v873
        %v888 = vpack.c.b16 %v876, %v875
        %v889 = vpack.c.b16 %v878, %v877
        %v890 = vpack.c.b16 %v880, %v879
        %v891 = vpack.c.b16 %v882, %v881
        %v892 = vpack.c.b16 %v884, %v883
        %901 = vmatprep.subr.bf16.mxu0 0
        %902 = vmatpush1.bf16.msra.mxu0 %v885
        %903 = vmatprep.subr.bf16.mxu0 0
        %904 = vmatpush1.bf16.msra.mxu0 %v886
        %905 = vmatprep.subr.bf16.mxu0 0
        %906 = vmatpush1.bf16.msra.mxu0 %v887
        %907 = vmatprep.subr.bf16.mxu0 0
        %908 = vmatpush1.bf16.msra.mxu0 %v888
        %909 = vmatprep.subr.bf16.mxu0 0
        %910 = vmatpush1.bf16.msra.mxu0 %v889
        %911 = vmatprep.subr.bf16.mxu0 0
        %912 = vmatpush1.bf16.msra.mxu0 %v890
        %913 = vmatprep.subr.bf16.mxu0 0
        %914 = vmatpush1.bf16.msra.mxu0 %v891
        %915 = vmatprep.subr.bf16.mxu0 0
        %916 = vmatpush1.bf16.msra.mxu0 %v892
        %917 = vmatprep.subr.bf16.mxu0 0
        %918 = vmatpush1.bf16.msra.mxu0 0
        %919 = vmatprep.subr.bf16.mxu0 0
        %920 = vmatpush1.bf16.msra.mxu0 0
        %921 = vmatprep.subr.bf16.mxu0 0
        %922 = vmatpush1.bf16.msra.mxu0 0
        %923 = vmatprep.subr.bf16.mxu0 0
        %924 = vmatpush1.bf16.msra.mxu0 0
        %925 = vmatprep.subr.bf16.mxu0 0
        %926 = vmatpush1.bf16.msra.mxu0 0
        %927 = vmatprep.subr.bf16.mxu0 0
        %928 = vmatpush1.bf16.msra.mxu0 0
        %929 = vmatprep.subr.bf16.mxu0 0
        %930 = vmatpush1.bf16.msra.mxu0 0
        %931 = vmatprep.subr.bf16.mxu0 0
        %932 = vmatpush1.bf16.msra.mxu0 0
        %933 = vmatprep.mubr.bf16.mxu0 0
        %934 = vmatmul.mubr.bf16.gmra.mrb[0].mxu0 %v828
        %v935 = vpop.f32.mrb[0].mxu0
        %v936 = vadd.f32 %v851, %v935
        %v937 = vpop.f32.mrb[0].mxu0
        %v938 = vpop.f32.mrb[0].mxu0
        %v939 = vpop.f32.mrb[0].mxu0
        %940 = vdwg.mxu0
        %v941 = vadd.f32 %v936, %v221
        %942 = vst.msk [vmem:[%s215] sm:$0xff] %vm280, %v941
        %s943 = sand.u32 %s137, 1
        %s944 = scalar_lea.sflag [#allocation3], %s943
        %s945 = sand.u32 %s137, 1
        %s946 = smul.addr %s945, 8
        %s947 = scalar_lea.vmem [#allocation2], %s946
        // Predicated region
        $region41: #{mha_forward.1} parent=39 // pred_check
          %p948 = pneg %p147
        $region42: #{mha_forward.1} parent=39 // pred_check_branch
          %950 = sbr.rel (%p948) target = $region44
        $region43: #{mha_forward.1} parent=39 // pred_region
          %s952 = ssub.s32 128, 128
          %953 = vsyncadd %s944, %s952
          %s954 = smul.addr %s19, 128
          %s955 = scalar_lea.hbm %s5, %s954
          %s957 = sshll.u32 %s947, 4
          %s958 = int_to_ptr.vmem [resolvable:$true] %s957
          %960 = dma.vmem_to_hbm [thread:$0]  %s958, 128, %s955, %s944
        $region44: #{mha_forward.1} parent=39 // pred_fallthru
          _
      $region40: #{mha_forward.1} parent=5 // pred_fallthru
        _
      %p961 = scmp.le.s32.totalorder 2, %s14
      // Predicated region
      $region45: #{mha_forward.1} parent=5 // pred_check
        %p962 = pneg %p961
      $region46: #{mha_forward.1} parent=5 // pred_check_branch
        %964 = sbr.rel (%p962) target = $region48
      $region47: #{mha_forward.1} parent=5 // pred_region
        %s965 = ssub.s32 %s14, 2
        // Predicated region
        $region49: #{mha_forward.1} parent=47 // pred_check
          %p966 = pneg %p153
        $region50: #{mha_forward.1} parent=47 // pred_check_branch
          %968 = sbr.rel (%p966) target = $region52
        $region51: #{mha_forward.1} parent=47 // pred_region
          %s969 = sand.u32 %s138, 1
          %s970 = scalar_lea.sflag [#allocation3], %s969
          %s971 = sand.u32 %s138, 1
          %s972 = smul.addr %s971, 8
          %s973 = scalar_lea.vmem [#allocation2], %s972
          %974 = dma.done %s970, 128
        $region52: #{mha_forward.1} parent=47 // pred_fallthru
          _
      $region48: #{mha_forward.1} parent=5 // pred_fallthru
        _
    $region6: #{mha_forward.1} parent=1 // loop_footer
      %s18 = sadd.s32 1, %s14
    $region7: #{mha_forward.1} parent=1 // loop_footer_branch
      %13 = sbr.rel target = $region3
    $region8: #{mha_forward.1} parent=1 // loop_exit
      _
    %975 = vsyncpa [#allocation3], 1
    %s976 = scalar_lea.sflag [#allocation3], 1
    %977 = vsyncpa %s976, 1

</llo_original>
